<compile_context>
chip_gen: v7x
topology: tpu7x:2x2x1
jax: 0.10.0
libtpu: 0.0.40
codegen_flags: <defaults>
</compile_context>

<pallas_src>
import jax
import jax.numpy as jnp
from jax.experimental import pallas as pl
from jax.experimental.pallas import tpu as pltpu

# NOTE: the original module hard-codes PI = 3.14159 (not math.pi); keep it.
PI = 3.14159
A = (2 * PI) ** 0.5


def _gaussian_bond_kernel(x_ref, sel_ref, const_ref, o_ref):
    # x_ref:     (rb, K)  f32   K consecutive bond scalars per output row
    # sel_ref:   (K, W)   bf16  0/1 selection: output lane m reads x column m // nhead
    # const_ref: (5, W)   f32   rows = [mul, bias, mean, -0.5/std^2, 1/(A*std)] per lane
    # o_ref:     (rb, W)  f32   lane m of row r -> bond K*r + m//nhead, head m % nhead
    x = x_ref[...]

    # Exact 3-way bf16 split: hi + mid + lo reconstructs the f32 value exactly,
    # so the selection matmuls below reproduce x bit-exactly (products are x_k*1.0).
    hi = x.astype(jnp.bfloat16)
    r = x - hi.astype(jnp.float32)
    mid = r.astype(jnp.bfloat16)
    lo = (r - mid.astype(jnp.float32)).astype(jnp.bfloat16)

    s = sel_ref[...]
    x_rep = (jnp.dot(hi, s, preferred_element_type=jnp.float32)
             + jnp.dot(mid, s, preferred_element_type=jnp.float32)
             + jnp.dot(lo, s, preferred_element_type=jnp.float32))     # (rb, W)

    mul = const_ref[0:1, :]
    bias = const_ref[1:2, :]
    mean = const_ref[2:3, :]
    nhiv = const_ref[3:4, :]        # -0.5 / std^2  (folded -0.5, hoisted per head)
    coef = const_ref[4:5, :]        # 1 / (A * std)

    d = (x_rep * mul + bias) - mean                 # same op order as the module
    o_ref[...] = (jnp.exp(d * d * nhiv) * coef).astype(o_ref.dtype)


def _round_up(v, m):
    return ((v + m - 1) // m) * m


def gaussian_bond_layer(x, means_w, stds_w, mul_w, bias_w, *, block_rows=None):
    """x: (N, 1) f32 -> (N, nhead) f32 (matches GaussianBondLayer.forward)."""
    N = int(x.shape[0])
    nhead = int(means_w.shape[-1])
    if 128 % nhead != 0:
        # TODO(synk): general nhead needs a different lane packing; nhead | 128
        # covers the module default (nhead=16).
        raise NotImplementedError("gaussian_bond_layer requires 128 % nhead == 0")
    G = 128 // nhead

    # K bonds per kernel row, W = K*nhead lanes per row (always a multiple of 128).
    K = G * max(1, 64 // G)
    if N % K != 0:
        # Prefer the largest K (multiple of G) dividing N to avoid the pad+slice copy.
        K = next((k for k in range(K, G - 1, -G) if N % k == 0), K)
    W = K * nhead

    N_pad = _round_up(max(N, K), K)
    x_flat = x.reshape(-1).astype(jnp.float32)
    if N_pad != N:
        x_flat = jnp.pad(x_flat, (0, N_pad - N))
    R = N_pad // K
    x_k = x_flat.reshape(R, K)

    mean = means_w.reshape(nhead).astype(jnp.float32)
    std = jnp.abs(stds_w.reshape(nhead).astype(jnp.float32)) + 1e-05
    mul = mul_w.reshape(()).astype(jnp.float32)
    bias = bias_w.reshape(()).astype(jnp.float32)

    reps = W // nhead
    consts = jnp.stack([
        jnp.broadcast_to(mul, (W,)),
        jnp.broadcast_to(bias, (W,)),
        jnp.tile(mean, reps),                  # mean[m % nhead]
        jnp.tile(-0.5 / (std * std), reps),    # -0.5/std^2 folded per head
        jnp.tile(1.0 / (A * std), reps),       # normalizer per head
    ])                                         # (5, W) f32

    # 0/1 selection matrix: output lane m takes x column m // nhead.
    src_col = jnp.arange(W) // nhead
    sel = (src_col[None, :] == jnp.arange(K)[:, None]).astype(jnp.bfloat16)  # (K, W)

    # Tile choice: ~2 MiB output tiles amortize the ~0.35 us per-grid-step cost;
    # keep the grid even when >1 block so v7x's two TensorCores split evenly.
    if block_rows is None:
        block_rows = _round_up(max(8, (2 * 1024 * 1024) // (W * 4)), 8)
    if R <= block_rows:
        rb, nblocks = R, 1
    else:
        nblocks = pl.cdiv(R, block_rows)
        if nblocks % 2:
            nblocks += 1
        rb = _round_up(pl.cdiv(R, nblocks), 8)
        nblocks = pl.cdiv(R, rb)

    out = pl.pallas_call(
        _gaussian_bond_kernel,
        out_shape=jax.ShapeDtypeStruct((R, W), jnp.float32),
        grid=(nblocks,),
        in_specs=[
            pl.BlockSpec((rb, K), lambda i: (i, 0)),     # x rows (lane-dense-ish)
            pl.BlockSpec((K, W), lambda i: (0, 0)),      # selection matrix (resident)
            pl.BlockSpec((5, W), lambda i: (0, 0)),      # per-lane constants (resident)
        ],
        out_specs=pl.BlockSpec((rb, W), lambda i: (i, 0)),
        compiler_params=pltpu.CompilerParams(
            dimension_semantics=("parallel",),
            vmem_limit_bytes=32 * 1024 * 1024,           # v5e default is only 16 MiB
        ),
    )(x_k, sel, consts)

    out = out.reshape(N_pad, nhead)                      # free row-major reshape
    if N_pad != N:
        out = out[:N]                                    # only hit for ragged N
    return out


def reference(x, means_w, stds_w, mul_w, bias_w):
    xa = mul_w.reshape(1, 1) * x.reshape(-1, 1) + bias_w.reshape(1, 1)
    xa = jnp.broadcast_to(xa, (x.shape[0], means_w.shape[-1]))
    mean = means_w.reshape(-1)
    std = jnp.abs(stds_w.reshape(-1)) + 1e-05
    return jnp.exp(-0.5 * ((xa - mean) / std) ** 2) / (A * std)


if __name__ == "__main__":
    nhead = 16
    N = 4096  # small, divisible by K=64 -> multi-block even grid with block_rows=16

    key = jax.random.PRNGKey(0)
    k_x, k_means, k_stds = jax.random.split(key, 3)

    # Parameter init matching nn.init in __init__: means~U(0,3), stds~U(0.1,10);
    # mul/bias get non-trivial values to exercise the affine path.
    means_w = jax.random.uniform(k_means, (1, nhead), jnp.float32, 0.0, 3.0)
    stds_w = jax.random.uniform(k_stds, (1, nhead), jnp.float32, 0.1, 10.0)
    mul_w = jnp.full((1, 1), 1.25, jnp.float32)
    bias_w = jnp.full((1, 1), -0.1, jnp.float32)

    x = jax.random.normal(k_x, (N, 1), jnp.float32)

    # Multi-block case (grid of 4, even) -- small block_rows just to exercise tiling.
    out = gaussian_bond_layer(x, means_w, stds_w, mul_w, bias_w, block_rows=16)
    out = jax.block_until_ready(out)
    ref = reference(x, means_w, stds_w, mul_w, bias_w)
    assert out.shape == (N, nhead)
    assert out.dtype == jnp.float32
    assert jnp.allclose(out, ref, rtol=1e-5, atol=1e-6), float(
        jnp.max(jnp.abs(out - ref))
    )

    # Ragged N (no multiple of 8 divides it) exercises the pad + slice path.
    N2 = 333
    x2 = jax.random.normal(jax.random.PRNGKey(1), (N2, 1), jnp.float32)
    out2 = jax.block_until_ready(
        gaussian_bond_layer(x2, means_w, stds_w, mul_w, bias_w)
    )
    ref2 = reference(x2, means_w, stds_w, mul_w, bias_w)
    assert out2.shape == (N2, nhead)
    assert jnp.allclose(out2, ref2, rtol=1e-5, atol=1e-6), float(
        jnp.max(jnp.abs(out2 - ref2))
    )

    print("KERNEL_OK")
</pallas_src>

<mosaic_0001>
module attributes {stable_mosaic.version = 11 : i64} {
  func.func @_gaussian_bond_kernel(%arg0: i32, %arg1: memref<16x64xf32, #tpu.memory_space<vmem>>, %arg2: memref<64x1024xbf16, #tpu.memory_space<vmem>>, %arg3: memref<5x1024xf32, #tpu.memory_space<vmem>>, %arg4: memref<16x1024xf32, #tpu.memory_space<vmem>>) attributes {dimension_semantics = [#tpu.dimension_semantics<parallel>], iteration_bounds = array<i64: 4>, scalar_prefetch = 0 : i64, scratch_operands = 0 : i64, tpu.core_type = #tpu.core_type<tc>, window_params = [{transform_indices = @transform_0, window_bounds = array<i64: 16, 64>}, {pipeline_mode = #tpu.pipeline_mode<synchronous>, transform_indices = @transform_1, window_bounds = array<i64: 64, 1024>}, {pipeline_mode = #tpu.pipeline_mode<synchronous>, transform_indices = @transform_2, window_bounds = array<i64: 5, 1024>}, {transform_indices = @transform_3, window_bounds = array<i64: 16, 1024>}]} {
    %c0 = arith.constant 0 : index
    %c0_0 = arith.constant 0 : index
    %0 = vector.load %arg1[%c0, %c0_0] : memref<16x64xf32, #tpu.memory_space<vmem>>, vector<16x64xf32>
    %1 = arith.truncf %0 : vector<16x64xf32> to vector<16x64xbf16>
    %2 = arith.extf %1 : vector<16x64xbf16> to vector<16x64xf32>
    %3 = arith.subf %0, %2 : vector<16x64xf32>
    %4 = arith.truncf %3 : vector<16x64xf32> to vector<16x64xbf16>
    %5 = arith.extf %4 : vector<16x64xbf16> to vector<16x64xf32>
    %6 = arith.subf %3, %5 : vector<16x64xf32>
    %7 = arith.truncf %6 : vector<16x64xf32> to vector<16x64xbf16>
    %c0_1 = arith.constant 0 : index
    %c0_2 = arith.constant 0 : index
    %8 = vector.load %arg2[%c0_1, %c0_2] : memref<64x1024xbf16, #tpu.memory_space<vmem>>, vector<64x1024xbf16>
    %cst = arith.constant dense<0.000000e+00> : vector<16x1024xf32>
    %9 = tpu.matmul %1, %8, %cst {dimension_numbers = #tpu.dot_dimension_numbers<[1], [0], [0], [1], [0, 0, 1, 1], [], []>} : vector<16x64xbf16>, vector<64x1024xbf16>, vector<16x1024xf32> -> vector<16x1024xf32>
    %cst_3 = arith.constant dense<0.000000e+00> : vector<16x1024xf32>
    %10 = tpu.matmul %4, %8, %cst_3 {dimension_numbers = #tpu.dot_dimension_numbers<[1], [0], [0], [1], [0, 0, 1, 1], [], []>} : vector<16x64xbf16>, vector<64x1024xbf16>, vector<16x1024xf32> -> vector<16x1024xf32>
    %11 = arith.addf %9, %10 : vector<16x1024xf32>
    %cst_4 = arith.constant dense<0.000000e+00> : vector<16x1024xf32>
    %12 = tpu.matmul %7, %8, %cst_4 {dimension_numbers = #tpu.dot_dimension_numbers<[1], [0], [0], [1], [0, 0, 1, 1], [], []>} : vector<16x64xbf16>, vector<64x1024xbf16>, vector<16x1024xf32> -> vector<16x1024xf32>
    %13 = arith.addf %11, %12 : vector<16x1024xf32>
    %c0_5 = arith.constant 0 : index
    %c0_6 = arith.constant 0 : index
    %14 = vector.load %arg3[%c0_5, %c0_6] : memref<5x1024xf32, #tpu.memory_space<vmem>>, vector<1x1024xf32>
    %c1 = arith.constant 1 : index
    %c0_7 = arith.constant 0 : index
    %15 = vector.load %arg3[%c1, %c0_7] : memref<5x1024xf32, #tpu.memory_space<vmem>>, vector<1x1024xf32>
    %c2 = arith.constant 2 : index
    %c0_8 = arith.constant 0 : index
    %16 = vector.load %arg3[%c2, %c0_8] : memref<5x1024xf32, #tpu.memory_space<vmem>>, vector<1x1024xf32>
    %c3 = arith.constant 3 : index
    %c0_9 = arith.constant 0 : index
    %17 = vector.load %arg3[%c3, %c0_9] : memref<5x1024xf32, #tpu.memory_space<vmem>>, vector<1x1024xf32>
    %c4 = arith.constant 4 : index
    %c0_10 = arith.constant 0 : index
    %18 = vector.load %arg3[%c4, %c0_10] : memref<5x1024xf32, #tpu.memory_space<vmem>>, vector<1x1024xf32>
    %19 = vector.broadcast %14 : vector<1x1024xf32> to vector<16x1024xf32>
    %20 = arith.mulf %13, %19 : vector<16x1024xf32>
    %21 = vector.broadcast %15 : vector<1x1024xf32> to vector<16x1024xf32>
    %22 = arith.addf %20, %21 : vector<16x1024xf32>
    %23 = vector.broadcast %16 : vector<1x1024xf32> to vector<16x1024xf32>
    %24 = arith.subf %22, %23 : vector<16x1024xf32>
    %25 = arith.mulf %24, %24 : vector<16x1024xf32>
    %26 = vector.broadcast %17 : vector<1x1024xf32> to vector<16x1024xf32>
    %27 = arith.mulf %25, %26 : vector<16x1024xf32>
    %28 = math.exp %27 : vector<16x1024xf32>
    %29 = vector.broadcast %18 : vector<1x1024xf32> to vector<16x1024xf32>
    %30 = arith.mulf %28, %29 : vector<16x1024xf32>
    %c0_11 = arith.constant 0 : index
    %c0_12 = arith.constant 0 : index
    %31 = vector.load %arg4[%c0_11, %c0_12] : memref<16x1024xf32, #tpu.memory_space<vmem>>, vector<16x1024xf32>
    tpu.vector_store %arg4[%c0_11, %c0_12], %30 {strides = array<i32>} : memref<16x1024xf32, #tpu.memory_space<vmem>>, vector<16x1024xf32>,
    return
  }
  func.func @transform_0(%arg0: i32) -> (i32, i32) {
    %c0_i32 = arith.constant 0 : i32
    %c0_i32_0 = arith.constant 0 : i32
    return %arg0, %c0_i32 : i32, i32
  }
  func.func @transform_1(%arg0: i32) -> (i32, i32) {
    %c0_i32 = arith.constant 0 : i32
    %c0_i32_0 = arith.constant 0 : i32
    %c0_i32_1 = arith.constant 0 : i32
    return %c0_i32, %c0_i32_0 : i32, i32
  }
  func.func @transform_2(%arg0: i32) -> (i32, i32) {
    %c0_i32 = arith.constant 0 : i32
    %c0_i32_0 = arith.constant 0 : i32
    %c0_i32_1 = arith.constant 0 : i32
    return %c0_i32, %c0_i32_0 : i32, i32
  }
  func.func @transform_3(%arg0: i32) -> (i32, i32) {
    %c0_i32 = arith.constant 0 : i32
    %c0_i32_0 = arith.constant 0 : i32
    return %arg0, %c0_i32 : i32, i32
  }
}

</mosaic_0001>

<llo_original>
// kernel: tpu_custom_call.1
$region0: #{tpu_custom_call.1}
  #allocation0 [shape = 'u32[]', space=smem, size = 0x4, offset = 0x4, fixed_abs, tag = 'smem constant byte address 0x4 - core index']
  #allocation1 [shape = 'u32[144,128]{1,0:T(1,128)}', space=vmem, size = 0x12000, scoped, tag = 'internal scratch']
  %s0 = inlined_call_operand.hbm [shape: f32[64,64], index: 0, kind: input, shape index: {}]
  %s1 = inlined_call_operand.hbm [shape: bf16[64,1024], index: 1, kind: input, shape index: {}]
  %s2 = inlined_call_operand.hbm [shape: f32[5,1024], index: 2, kind: input, shape index: {}]
  %s3 = inlined_call_operand.hbm [shape: f32[64,1024], index: 3, kind: output, shape index: {}]
  %s4 = sld [smem:[#allocation0]]
  $region57: #{tpu_custom_call.1} parent=0
    _
  %s6 = ssub.s32 1, %s4
  %s7 = scalar_select 0, %s6, %s4
  $region1: #{tpu_custom_call.1} parent=0
    #allocation2 [shape = 'u8[16384]{0}', space=vmem, size = 0x4000, scoped, tag = 'input window, operand 0']
    #allocation3 [shape = 's32[2]{0}', space=sflag, size = 0x8, scoped, tag = 'scoped memory for tpu_custom_call.1']
    #allocation4 [shape = 's32[2]{0}', space=sflag, size = 0x8, scoped, tag = 'scoped memory for tpu_custom_call.1']
    #allocation5 [shape = 'u8[131072]{0}', space=vmem, size = 0x20000, scoped, tag = 'input window, operand 1, single buffered']
    #allocation6 [shape = 's32[1]{0}', space=sflag, size = 0x4, scoped, tag = 'scoped memory for tpu_custom_call.1']
    #allocation7 [shape = 'u8[32768]{0}', space=vmem, size = 0x8000, scoped, tag = 'input window, operand 2, single buffered']
    #allocation8 [shape = 'u8[131072]{0}', space=vmem, size = 0x20000, scoped, tag = 'output window, operand 0']
    %8 = vsyncpa [#allocation3], 0
    %s9 = scalar_lea.sflag [#allocation3], 1
    %10 = vsyncpa %s9, 0
    %11 = vsyncpa [#allocation6], 0
    %12 = vsyncpa [#allocation4], 0
    %s13 = scalar_lea.sflag [#allocation4], 1
    %14 = vsyncpa %s13, 0
    loop: start=0, step=1, limit=6
    $region2: #{tpu_custom_call.1} parent=1 // loop_pre_header
      _
    $region3: #{tpu_custom_call.1} parent=1 // loop_header
      %s16 = sphi 0, %s20
      %p17 = scmp.ge.s32.totalorder %s16, 6
      %s26 = sphi 0, %s28
      %s29 = sphi 0, %s26
      %s30 = sphi 0, %s29
      %s46 = sphi 0, %s30
      %s50 = sphi 0, %s50
      %s52 = sphi 0, %s50
      %s53 = sphi 0, %s52
      %s67 = sphi 0, %s53
      %s71 = sphi 0, %s71
      %s73 = sphi 0, %s71
      %s74 = sphi 0, %s73
      %s88 = sphi 0, %s74
      %s94 = sphi 0, %s96
      %s97 = sphi 0, %s94
      %s98 = sphi 0, %s97
      %s114 = sphi 0, %s98
    $region4: #{tpu_custom_call.1} parent=1 // loop_header_branch
      %19 = sbr.rel (%p17) target = $region8
    $region5: #{tpu_custom_call.1} parent=1 // loop_body
      %s21 = ssub.s32 %s16, 1
      %s22 = ssub.s32 %s16, 2
      %s23 = sadd.s32 %s16, 1
      %s24 = ssub.s32 %s16, %s23
      %p25 = scmp.eq.s32.totalorder %s24, 0
      %s27 = sadd.s32 %s26, 1
      %s28 = scalar_select %p25, %s26, %s27
      %p31 = pneg %p25
      %p32 = scmp.eq.s32.totalorder %s16, 3
      %p33 = por %p31, %p32
      %p34 = scmp.ne.s32.totalorder %s26, %s29
      %p35 = scmp.eq.s32.totalorder %s16, 0
      %p36 = por %p34, %p35
      %p37 = scmp.ne.s32.totalorder %s26, %s29
      %p38 = scmp.eq.s32.totalorder %s21, 3
      %p39 = por %p37, %p38
      %p40 = scmp.ne.s32.totalorder %s29, %s30
      %p41 = scmp.eq.s32.totalorder %s21, 0
      %p42 = por %p40, %p41
      %p43 = scmp.ne.s32.totalorder %s29, %s30
      %p44 = scmp.eq.s32.totalorder %s22, 3
      %p45 = por %p43, %p44
      %p47 = scmp.ne.s32.totalorder %s30, %s46
      %p48 = scmp.eq.s32.totalorder %s22, 0
      %p49 = por %p47, %p48
      %s51 = sadd.s32 %s50, 1
      %p54 = scmp.eq.s32.totalorder %s16, 3
      %p55 = scmp.ne.s32.totalorder %s50, %s52
      %p56 = scmp.eq.s32.totalorder %s16, 0
      %p57 = por %p55, %p56
      %p58 = scmp.ne.s32.totalorder %s50, %s52
      %p59 = scmp.eq.s32.totalorder %s21, 3
      %p60 = por %p58, %p59
      %p61 = scmp.ne.s32.totalorder %s52, %s53
      %p62 = scmp.eq.s32.totalorder %s21, 0
      %p63 = por %p61, %p62
      %p64 = scmp.ne.s32.totalorder %s52, %s53
      %p65 = scmp.eq.s32.totalorder %s22, 3
      %p66 = por %p64, %p65
      %p68 = scmp.ne.s32.totalorder %s53, %s67
      %p69 = scmp.eq.s32.totalorder %s22, 0
      %p70 = por %p68, %p69
      %s72 = sadd.s32 %s71, 1
      %p75 = scmp.eq.s32.totalorder %s16, 3
      %p76 = scmp.ne.s32.totalorder %s71, %s73
      %p77 = scmp.eq.s32.totalorder %s16, 0
      %p78 = por %p76, %p77
      %p79 = scmp.ne.s32.totalorder %s71, %s73
      %p80 = scmp.eq.s32.totalorder %s21, 3
      %p81 = por %p79, %p80
      %p82 = scmp.ne.s32.totalorder %s73, %s74
      %p83 = scmp.eq.s32.totalorder %s21, 0
      %p84 = por %p82, %p83
      %p85 = scmp.ne.s32.totalorder %s73, %s74
      %p86 = scmp.eq.s32.totalorder %s22, 3
      %p87 = por %p85, %p86
      %p89 = scmp.ne.s32.totalorder %s74, %s88
      %p90 = scmp.eq.s32.totalorder %s22, 0
      %p91 = por %p89, %p90
      %s92 = ssub.s32 %s16, %s23
      %p93 = scmp.eq.s32.totalorder %s92, 0
      %s95 = sadd.s32 %s94, 1
      %s96 = scalar_select %p93, %s94, %s95
      %p99 = pneg %p93
      %p100 = scmp.eq.s32.totalorder %s16, 3
      %p101 = por %p99, %p100
      %p102 = scmp.ne.s32.totalorder %s94, %s97
      %p103 = scmp.eq.s32.totalorder %s16, 0
      %p104 = por %p102, %p103
      %p105 = scmp.ne.s32.totalorder %s94, %s97
      %p106 = scmp.eq.s32.totalorder %s21, 3
      %p107 = por %p105, %p106
      %p108 = scmp.ne.s32.totalorder %s97, %s98
      %p109 = scmp.eq.s32.totalorder %s21, 0
      %p110 = por %p108, %p109
      %p111 = scmp.ne.s32.totalorder %s97, %s98
      %p112 = scmp.eq.s32.totalorder %s22, 3
      %p113 = por %p111, %p112
      %p115 = scmp.ne.s32.totalorder %s98, %s114
      %p116 = scmp.eq.s32.totalorder %s22, 0
      %p117 = por %p115, %p116
      %p118 = scmp.le.s32.totalorder 1, %s16
      %p119 = scmp.lt.s32.totalorder %s16, 5
      %p120 = pnand %p118, %p119
      %p121 = pneg %p120
      // Predicated region
      $region9: #{tpu_custom_call.1} parent=5 // pred_check
        _
      $region10: #{tpu_custom_call.1} parent=5 // pred_check_branch
        %123 = sbr.rel (%p120) target = $region12
      $region11: #{tpu_custom_call.1} parent=5 // pred_region
        %s124 = ssub.s32 %s16, 1
        // Predicated region
        $region13: #{tpu_custom_call.1} parent=11 // pred_check
          %p125 = pneg %p63
        $region14: #{tpu_custom_call.1} parent=11 // pred_check_branch
          %127 = sbr.rel (%p125) target = $region16
        $region15: #{tpu_custom_call.1} parent=11 // pred_region
          %s129 = ssub.s32 4096, 4096
          %130 = vsyncadd [#allocation6], %s129
          %s131 = sshll.u32 [#allocation5], 4
          %s132 = int_to_ptr.vmem [resolvable:$true] %s131
          %137 = dma.hbm_to_vmem [thread:$0]  %s1, 4096, %s132, [#allocation6], 512, 512, 32
        $region16: #{tpu_custom_call.1} parent=11 // pred_fallthru
          _
        // Predicated region
        $region17: #{tpu_custom_call.1} parent=11 // pred_check
          %p138 = pneg %p84
        $region18: #{tpu_custom_call.1} parent=11 // pred_check_branch
          %140 = sbr.rel (%p138) target = $region20
        $region19: #{tpu_custom_call.1} parent=11 // pred_region
          %s142 = ssub.s32 1024, 1024
          %143 = vsyncadd [#allocation6], %s142
          %s145 = sshll.u32 [#allocation7], 4
          %s146 = int_to_ptr.vmem [resolvable:$true] %s145
          %148 = dma.hbm_to_vmem [thread:$0]  %s2, 1024, %s146, [#allocation6]
        $region20: #{tpu_custom_call.1} parent=11 // pred_fallthru
          _
      $region12: #{tpu_custom_call.1} parent=5 // pred_fallthru
        _
      %p149 = scmp.lt.s32.totalorder %s16, 4
      // Predicated region
      $region21: #{tpu_custom_call.1} parent=5 // pred_check
        %p150 = pneg %p149
      $region22: #{tpu_custom_call.1} parent=5 // pred_check_branch
        %152 = sbr.rel (%p150) target = $region24
      $region23: #{tpu_custom_call.1} parent=5 // pred_region
        // Predicated region
        $region25: #{tpu_custom_call.1} parent=23 // pred_check
          %p153 = pneg %p36
        $region26: #{tpu_custom_call.1} parent=23 // pred_check_branch
          %155 = sbr.rel (%p153) target = $region28
        $region27: #{tpu_custom_call.1} parent=23 // pred_region
          %s156 = sand.u32 %s26, 1
          %s157 = scalar_lea.sflag [#allocation3], %s156
          %s158 = sand.u32 %s26, 1
          %s159 = smul.addr %s158, 16
          %s160 = scalar_lea.vmem [#allocation2], %s159
          %s161 = smul.u32 2, %s16
          %s163 = ssub.s32 256, 256
          %164 = vsyncadd %s157, %s163
          %s165 = smul.addr %s161, 128
          %s166 = scalar_lea.hbm %s0, %s165
          %s167 = sshll.u32 %s160, 4
          %s168 = int_to_ptr.vmem [resolvable:$true] %s167
          %173 = dma.hbm_to_vmem [thread:$0]  %s166, 256, %s168, %s157, 128, 128, 8
        $region28: #{tpu_custom_call.1} parent=23 // pred_fallthru
          _
      $region24: #{tpu_custom_call.1} parent=5 // pred_fallthru
        _
      %p174 = scmp.le.s32.totalorder 1, %s16
      %p175 = scmp.lt.s32.totalorder %s16, 5
      %p176 = pnand %p174, %p175
      %p177 = pneg %p176
      // Predicated region
      $region29: #{tpu_custom_call.1} parent=5 // pred_check
        _
      $region30: #{tpu_custom_call.1} parent=5 // pred_check_branch
        %179 = sbr.rel (%p176) target = $region32
      $region31: #{tpu_custom_call.1} parent=5 // pred_region
        %s180 = ssub.s32 %s16, 1
        %s181 = sand.u32 %s29, 1
        %s182 = scalar_lea.sflag [#allocation3], %s181
        %s183 = sand.u32 %s29, 1
        %s184 = smul.addr %s183, 16
        %s185 = scalar_lea.vmem [#allocation2], %s184
        // Predicated region
        $region33: #{tpu_custom_call.1} parent=31 // pred_check
          %p186 = pneg %p42
        $region34: #{tpu_custom_call.1} parent=31 // pred_check_branch
          %188 = sbr.rel (%p186) target = $region36
        $region35: #{tpu_custom_call.1} parent=31 // pred_region
          %189 = dma.done %s182, 256
        $region36: #{tpu_custom_call.1} parent=31 // pred_fallthru
          _
        // Predicated region
        $region37: #{tpu_custom_call.1} parent=31 // pred_check
          %p190 = pneg %p63
        $region38: #{tpu_custom_call.1} parent=31 // pred_check_branch
          %192 = sbr.rel (%p190) target = $region40
        $region39: #{tpu_custom_call.1} parent=31 // pred_region
          %193 = dma.done [#allocation6], 4096
        $region40: #{tpu_custom_call.1} parent=31 // pred_fallthru
          _
        // Predicated region
        $region41: #{tpu_custom_call.1} parent=31 // pred_check
          %p194 = pneg %p84
        $region42: #{tpu_custom_call.1} parent=31 // pred_check_branch
          %196 = sbr.rel (%p194) target = $region44
        $region43: #{tpu_custom_call.1} parent=31 // pred_region
          %197 = dma.done [#allocation6], 1024
        $region44: #{tpu_custom_call.1} parent=31 // pred_fallthru
          _
        %s198 = sand.u32 %s29, 1
        %s199 = scalar_lea.sflag [#allocation3], %s198
        %s200 = sand.u32 %s29, 1
        %s201 = smul.addr %s200, 16
        %s202 = scalar_lea.vmem [#allocation2], %s201
        %p203 = pneg %p42
        %p204 = pneg %p39
        %p205 = pneg %p63
        %p206 = pneg %p60
        %p207 = pneg %p84
        %p208 = pneg %p81
        %p209 = pneg %p110
        %p210 = pneg %p107
        %s211 = sand.u32 %s97, 1
        %s212 = scalar_lea.sflag [#allocation4], %s211
        %s213 = sand.u32 %s97, 1
        %s214 = smul.addr %s213, 128
        %s215 = scalar_lea.vmem [#allocation8], %s214
        %s216 = smul.u32 2, %s21
        %s217 = smul.u32 2, %s21
        %v219 = vld [vmem:[%s185] sm:$0xff]
        %v220 = vld [vmem:[%s185 + $0x8] sm:$0xff]
        %v221 = vpack.c.bf16 %v220, %v219
        %v222 = vunpack.c.l.bf16 %v221
        %v223 = vunpack.c.h.bf16 %v221
        %v224 = vsub.f32 %v219, %v222
        %v225 = vsub.f32 %v220, %v223
        %v226 = vpack.c.bf16 %v225, %v224
        %v227 = vunpack.c.l.bf16 %v226
        %v228 = vunpack.c.h.bf16 %v226
        %v229 = vsub.f32 %v224, %v227
        %v230 = vsub.f32 %v225, %v228
        %v231 = vpack.c.bf16 %v230, %v229
        %v232 = vld [vmem:[#allocation5] sm:$0xff]
        %v233 = vld [vmem:[#allocation5 + $0x8] sm:$0xff]
        %v234 = vld [vmem:[#allocation5 + $0x10] sm:$0xff]
        %v235 = vld [vmem:[#allocation5 + $0x18] sm:$0xff]
        %v236 = vld [vmem:[#allocation5 + $0x20] sm:$0xff]
        %v237 = vld [vmem:[#allocation5 + $0x28] sm:$0xff]
        %v238 = vld [vmem:[#allocation5 + $0x30] sm:$0xff]
        %v239 = vld [vmem:[#allocation5 + $0x38] sm:$0xff]
        %v240 = vld [vmem:[#allocation5 + $0x40] sm:$0xff]
        %v241 = vld [vmem:[#allocation5 + $0x48] sm:$0xff]
        %v242 = vld [vmem:[#allocation5 + $0x50] sm:$0xff]
        %v243 = vld [vmem:[#allocation5 + $0x58] sm:$0xff]
        %v244 = vld [vmem:[#allocation5 + $0x60] sm:$0xff]
        %v245 = vld [vmem:[#allocation5 + $0x68] sm:$0xff]
        %v246 = vld [vmem:[#allocation5 + $0x70] sm:$0xff]
        %v247 = vld [vmem:[#allocation5 + $0x78] sm:$0xff]
        %v248 = vld [vmem:[#allocation5 + $0x80] sm:$0xff]
        %v249 = vld [vmem:[#allocation5 + $0x88] sm:$0xff]
        %v250 = vld [vmem:[#allocation5 + $0x90] sm:$0xff]
        %v251 = vld [vmem:[#allocation5 + $0x98] sm:$0xff]
        %v252 = vld [vmem:[#allocation5 + $0xa0] sm:$0xff]
        %v253 = vld [vmem:[#allocation5 + $0xa8] sm:$0xff]
        %v254 = vld [vmem:[#allocation5 + $0xb0] sm:$0xff]
        %v255 = vld [vmem:[#allocation5 + $0xb8] sm:$0xff]
        %v256 = vld [vmem:[#allocation5 + $0xc0] sm:$0xff]
        %v257 = vld [vmem:[#allocation5 + $0xc8] sm:$0xff]
        %v258 = vld [vmem:[#allocation5 + $0xd0] sm:$0xff]
        %v259 = vld [vmem:[#allocation5 + $0xd8] sm:$0xff]
        %v260 = vld [vmem:[#allocation5 + $0xe0] sm:$0xff]
        %v261 = vld [vmem:[#allocation5 + $0xe8] sm:$0xff]
        %v262 = vld [vmem:[#allocation5 + $0xf0] sm:$0xff]
        %v263 = vld [vmem:[#allocation5 + $0xf8] sm:$0xff]
        %v296 = vunpack.c.l.b16 %v232
        %v297 = vunpack.c.h.b16 %v232
        %v298 = vunpack.c.l.b16 %v233
        %v299 = vunpack.c.h.b16 %v233
        %v300 = vunpack.c.l.b16 %v234
        %v301 = vunpack.c.h.b16 %v234
        %v302 = vunpack.c.l.b16 %v235
        %v303 = vunpack.c.h.b16 %v235
        %v304 = vunpack.c.l.b16 %v236
        %v305 = vunpack.c.h.b16 %v236
        %v306 = vunpack.c.l.b16 %v237
        %v307 = vunpack.c.h.b16 %v237
        %v308 = vunpack.c.l.b16 %v238
        %v309 = vunpack.c.h.b16 %v238
        %v310 = vunpack.c.l.b16 %v239
        %v311 = vunpack.c.h.b16 %v239
        %v312 = vunpack.c.l.b16 %v240
        %v313 = vunpack.c.h.b16 %v240
        %v314 = vunpack.c.l.b16 %v241
        %v315 = vunpack.c.h.b16 %v241
        %v316 = vunpack.c.l.b16 %v242
        %v317 = vunpack.c.h.b16 %v242
        %v318 = vunpack.c.l.b16 %v243
        %v319 = vunpack.c.h.b16 %v243
        %v320 = vunpack.c.l.b16 %v244
        %v321 = vunpack.c.h.b16 %v244
        %v322 = vunpack.c.l.b16 %v245
        %v323 = vunpack.c.h.b16 %v245
        %v324 = vunpack.c.l.b16 %v246
        %v325 = vunpack.c.h.b16 %v246
        %v326 = vunpack.c.l.b16 %v247
        %v327 = vunpack.c.h.b16 %v247
        %v328 = vunpack.c.l.b16 %v248
        %v329 = vunpack.c.h.b16 %v248
        %v330 = vunpack.c.l.b16 %v249
        %v331 = vunpack.c.h.b16 %v249
        %v332 = vunpack.c.l.b16 %v250
        %v333 = vunpack.c.h.b16 %v250
        %v334 = vunpack.c.l.b16 %v251
        %v335 = vunpack.c.h.b16 %v251
        %v336 = vunpack.c.l.b16 %v252
        %v337 = vunpack.c.h.b16 %v252
        %v338 = vunpack.c.l.b16 %v253
        %v339 = vunpack.c.h.b16 %v253
        %v340 = vunpack.c.l.b16 %v254
        %v341 = vunpack.c.h.b16 %v254
        %v342 = vunpack.c.l.b16 %v255
        %v343 = vunpack.c.h.b16 %v255
        %v344 = vunpack.c.l.b16 %v256
        %v345 = vunpack.c.h.b16 %v256
        %v346 = vunpack.c.l.b16 %v257
        %v347 = vunpack.c.h.b16 %v257
        %v348 = vunpack.c.l.b16 %v258
        %v349 = vunpack.c.h.b16 %v258
        %v350 = vunpack.c.l.b16 %v259
        %v351 = vunpack.c.h.b16 %v259
        %v352 = vunpack.c.l.b16 %v260
        %v353 = vunpack.c.h.b16 %v260
        %v354 = vunpack.c.l.b16 %v261
        %v355 = vunpack.c.h.b16 %v261
        %v356 = vunpack.c.l.b16 %v262
        %v357 = vunpack.c.h.b16 %v262
        %v358 = vunpack.c.l.b16 %v263
        %v359 = vunpack.c.h.b16 %v263
        %v360 = vpack.c.b16 %v304, %v296
        %v361 = vpack.c.b16 %v305, %v297
        %v362 = vpack.c.b16 %v306, %v298
        %v363 = vpack.c.b16 %v307, %v299
        %v364 = vpack.c.b16 %v308, %v300
        %v365 = vpack.c.b16 %v309, %v301
        %v366 = vpack.c.b16 %v310, %v302
        %v367 = vpack.c.b16 %v311, %v303
        %v368 = vpack.c.b16 %v320, %v312
        %v369 = vpack.c.b16 %v321, %v313
        %v370 = vpack.c.b16 %v322, %v314
        %v371 = vpack.c.b16 %v323, %v315
        %v372 = vpack.c.b16 %v324, %v316
        %v373 = vpack.c.b16 %v325, %v317
        %v374 = vpack.c.b16 %v326, %v318
        %v375 = vpack.c.b16 %v327, %v319
        %v376 = vpack.c.b16 %v336, %v328
        %v377 = vpack.c.b16 %v337, %v329
        %v378 = vpack.c.b16 %v338, %v330
        %v379 = vpack.c.b16 %v339, %v331
        %v380 = vpack.c.b16 %v340, %v332
        %v381 = vpack.c.b16 %v341, %v333
        %v382 = vpack.c.b16 %v342, %v334
        %v383 = vpack.c.b16 %v343, %v335
        %v384 = vpack.c.b16 %v352, %v344
        %v385 = vpack.c.b16 %v353, %v345
        %v386 = vpack.c.b16 %v354, %v346
        %v387 = vpack.c.b16 %v355, %v347
        %v388 = vpack.c.b16 %v356, %v348
        %v389 = vpack.c.b16 %v357, %v349
        %v390 = vpack.c.b16 %v358, %v350
        %v391 = vpack.c.b16 %v359, %v351
        %vm424 = vcmask 523264
        %v426 = vsel %vm424, %v226, 0
        %428 = vmatprep.subr.bf16.mxu0 %v361
        %429 = vmatpush1.bf16.msra.mxu0 %v360
        %430 = vmatprep.subr.bf16.mxu0 %v369
        %431 = vmatpush1.bf16.msra.mxu0 %v368
        %432 = vmatprep.subr.bf16.mxu0 %v377
        %433 = vmatpush1.bf16.msra.mxu0 %v376
        %434 = vmatprep.subr.bf16.mxu0 %v385
        %435 = vmatpush1.bf16.msra.mxu0 %v384
        %436 = vmatprep.subr.bf16.mxu0 0
        %437 = vmatpush1.bf16.msra.mxu0 0
        %438 = vmatprep.subr.bf16.mxu0 0
        %439 = vmatpush1.bf16.msra.mxu0 0
        %440 = vmatprep.subr.bf16.mxu0 0
        %441 = vmatpush1.bf16.msra.mxu0 0
        %442 = vmatprep.subr.bf16.mxu0 0
        %443 = vmatpush1.bf16.msra.mxu0 0
        %444 = vmatprep.subr.bf16.mxu0 0
        %445 = vmatpush1.bf16.msra.mxu0 0
        %446 = vmatprep.subr.bf16.mxu0 0
        %447 = vmatpush1.bf16.msra.mxu0 0
        %448 = vmatprep.subr.bf16.mxu0 0
        %449 = vmatpush1.bf16.msra.mxu0 0
        %450 = vmatprep.subr.bf16.mxu0 0
        %451 = vmatpush1.bf16.msra.mxu0 0
        %452 = vmatprep.subr.bf16.mxu0 0
        %453 = vmatpush1.bf16.msra.mxu0 0
        %454 = vmatprep.subr.bf16.mxu0 0
        %455 = vmatpush1.bf16.msra.mxu0 0
        %456 = vmatprep.subr.bf16.mxu0 0
        %457 = vmatpush1.bf16.msra.mxu0 0
        %458 = vmatprep.subr.bf16.mxu0 0
        %459 = vmatpush1.bf16.msra.mxu0 0
        %460 = vmatprep.mubr.bf16.mxu0 0
        %461 = vmatmul.mubr.bf16.gmra.mrb[0].mxu0 %v426
        %v462 = vpop.f32.mrb[0].mxu0
        %v463 = vadd.f32 0.0, %v462
        %v464 = vpop.f32.mrb[0].mxu0
        %v465 = vadd.f32 0.0, %v464
        %v466 = vpop.f32.mrb[0].mxu0
        %v467 = vadd.f32 0.0, %v466
        %v468 = vpop.f32.mrb[0].mxu0
        %v469 = vadd.f32 0.0, %v468
        %470 = vdwg.mxu0
        %471 = vmatprep.subr.bf16.mxu0 %v363
        %472 = vmatpush1.bf16.msra.mxu0 %v362
        %473 = vmatprep.subr.bf16.mxu0 %v371
        %474 = vmatpush1.bf16.msra.mxu0 %v370
        %475 = vmatprep.subr.bf16.mxu0 %v379
        %476 = vmatpush1.bf16.msra.mxu0 %v378
        %477 = vmatprep.subr.bf16.mxu0 %v387
        %478 = vmatpush1.bf16.msra.mxu0 %v386
        %479 = vmatprep.subr.bf16.mxu0 0
        %480 = vmatpush1.bf16.msra.mxu0 0
        %481 = vmatprep.subr.bf16.mxu0 0
        %482 = vmatpush1.bf16.msra.mxu0 0
        %483 = vmatprep.subr.bf16.mxu0 0
        %484 = vmatpush1.bf16.msra.mxu0 0
        %485 = vmatprep.subr.bf16.mxu0 0
        %486 = vmatpush1.bf16.msra.mxu0 0
        %487 = vmatprep.subr.bf16.mxu0 0
        %488 = vmatpush1.bf16.msra.mxu0 0
        %489 = vmatprep.subr.bf16.mxu0 0
        %490 = vmatpush1.bf16.msra.mxu0 0
        %491 = vmatprep.subr.bf16.mxu0 0
        %492 = vmatpush1.bf16.msra.mxu0 0
        %493 = vmatprep.subr.bf16.mxu0 0
        %494 = vmatpush1.bf16.msra.mxu0 0
        %495 = vmatprep.subr.bf16.mxu0 0
        %496 = vmatpush1.bf16.msra.mxu0 0
        %497 = vmatprep.subr.bf16.mxu0 0
        %498 = vmatpush1.bf16.msra.mxu0 0
        %499 = vmatprep.subr.bf16.mxu0 0
        %500 = vmatpush1.bf16.msra.mxu0 0
        %501 = vmatprep.subr.bf16.mxu0 0
        %502 = vmatpush1.bf16.msra.mxu0 0
        %503 = vmatprep.mubr.bf16.mxu0 0
        %504 = vmatmul.mubr.bf16.gmra.mrb[0].mxu0 %v426
        %v505 = vpop.f32.mrb[0].mxu0
        %v506 = vadd.f32 0.0, %v505
        %v507 = vpop.f32.mrb[0].mxu0
        %v508 = vadd.f32 0.0, %v507
        %v509 = vpop.f32.mrb[0].mxu0
        %v510 = vadd.f32 0.0, %v509
        %v511 = vpop.f32.mrb[0].mxu0
        %v512 = vadd.f32 0.0, %v511
        %513 = vdwg.mxu0
        %514 = vmatprep.subr.bf16.mxu0 %v365
        %515 = vmatpush1.bf16.msra.mxu0 %v364
        %516 = vmatprep.subr.bf16.mxu0 %v373
        %517 = vmatpush1.bf16.msra.mxu0 %v372
        %518 = vmatprep.subr.bf16.mxu0 %v381
        %519 = vmatpush1.bf16.msra.mxu0 %v380
        %520 = vmatprep.subr.bf16.mxu0 %v389
        %521 = vmatpush1.bf16.msra.mxu0 %v388
        %522 = vmatprep.subr.bf16.mxu0 0
        %523 = vmatpush1.bf16.msra.mxu0 0
        %524 = vmatprep.subr.bf16.mxu0 0
        %525 = vmatpush1.bf16.msra.mxu0 0
        %526 = vmatprep.subr.bf16.mxu0 0
        %527 = vmatpush1.bf16.msra.mxu0 0
        %528 = vmatprep.subr.bf16.mxu0 0
        %529 = vmatpush1.bf16.msra.mxu0 0
        %530 = vmatprep.subr.bf16.mxu0 0
        %531 = vmatpush1.bf16.msra.mxu0 0
        %532 = vmatprep.subr.bf16.mxu0 0
        %533 = vmatpush1.bf16.msra.mxu0 0
        %534 = vmatprep.subr.bf16.mxu0 0
        %535 = vmatpush1.bf16.msra.mxu0 0
        %536 = vmatprep.subr.bf16.mxu0 0
        %537 = vmatpush1.bf16.msra.mxu0 0
        %538 = vmatprep.subr.bf16.mxu0 0
        %539 = vmatpush1.bf16.msra.mxu0 0
        %540 = vmatprep.subr.bf16.mxu0 0
        %541 = vmatpush1.bf16.msra.mxu0 0
        %542 = vmatprep.subr.bf16.mxu0 0
        %543 = vmatpush1.bf16.msra.mxu0 0
        %544 = vmatprep.subr.bf16.mxu0 0
        %545 = vmatpush1.bf16.msra.mxu0 0
        %546 = vmatprep.mubr.bf16.mxu0 0
        %547 = vmatmul.mubr.bf16.gmra.mrb[0].mxu0 %v426
        %v548 = vpop.f32.mrb[0].mxu0
        %v549 = vadd.f32 0.0, %v548
        %v550 = vpop.f32.mrb[0].mxu0
        %v551 = vadd.f32 0.0, %v550
        %v552 = vpop.f32.mrb[0].mxu0
        %v553 = vadd.f32 0.0, %v552
        %v554 = vpop.f32.mrb[0].mxu0
        %v555 = vadd.f32 0.0, %v554
        %556 = vdwg.mxu0
        %557 = vmatprep.subr.bf16.mxu0 %v367
        %558 = vmatpush1.bf16.msra.mxu0 %v366
        %559 = vmatprep.subr.bf16.mxu0 %v375
        %560 = vmatpush1.bf16.msra.mxu0 %v374
        %561 = vmatprep.subr.bf16.mxu0 %v383
        %562 = vmatpush1.bf16.msra.mxu0 %v382
        %563 = vmatprep.subr.bf16.mxu0 %v391
        %564 = vmatpush1.bf16.msra.mxu0 %v390
        %565 = vmatprep.subr.bf16.mxu0 0
        %566 = vmatpush1.bf16.msra.mxu0 0
        %567 = vmatprep.subr.bf16.mxu0 0
        %568 = vmatpush1.bf16.msra.mxu0 0
        %569 = vmatprep.subr.bf16.mxu0 0
        %570 = vmatpush1.bf16.msra.mxu0 0
        %571 = vmatprep.subr.bf16.mxu0 0
        %572 = vmatpush1.bf16.msra.mxu0 0
        %573 = vmatprep.subr.bf16.mxu0 0
        %574 = vmatpush1.bf16.msra.mxu0 0
        %575 = vmatprep.subr.bf16.mxu0 0
        %576 = vmatpush1.bf16.msra.mxu0 0
        %577 = vmatprep.subr.bf16.mxu0 0
        %578 = vmatpush1.bf16.msra.mxu0 0
        %579 = vmatprep.subr.bf16.mxu0 0
        %580 = vmatpush1.bf16.msra.mxu0 0
        %581 = vmatprep.subr.bf16.mxu0 0
        %582 = vmatpush1.bf16.msra.mxu0 0
        %583 = vmatprep.subr.bf16.mxu0 0
        %584 = vmatpush1.bf16.msra.mxu0 0
        %585 = vmatprep.subr.bf16.mxu0 0
        %586 = vmatpush1.bf16.msra.mxu0 0
        %587 = vmatprep.subr.bf16.mxu0 0
        %588 = vmatpush1.bf16.msra.mxu0 0
        %589 = vmatprep.mubr.bf16.mxu0 0
        %590 = vmatmul.mubr.bf16.gmra.mrb[0].mxu0 %v426
        %v591 = vpop.f32.mrb[0].mxu0
        %v592 = vadd.f32 0.0, %v591
        %v593 = vpop.f32.mrb[0].mxu0
        %v594 = vadd.f32 0.0, %v593
        %v595 = vpop.f32.mrb[0].mxu0
        %v596 = vadd.f32 0.0, %v595
        %v597 = vpop.f32.mrb[0].mxu0
        %v598 = vadd.f32 0.0, %v597
        %599 = vdwg.mxu0
        %v601 = vsel %vm424, %v221, 0
        %603 = vmatprep.subr.bf16.mxu0 %v361
        %604 = vmatpush1.bf16.msra.mxu0 %v360
        %605 = vmatprep.subr.bf16.mxu0 %v369
        %606 = vmatpush1.bf16.msra.mxu0 %v368
        %607 = vmatprep.subr.bf16.mxu0 %v377
        %608 = vmatpush1.bf16.msra.mxu0 %v376
        %609 = vmatprep.subr.bf16.mxu0 %v385
        %610 = vmatpush1.bf16.msra.mxu0 %v384
        %611 = vmatprep.subr.bf16.mxu0 0
        %612 = vmatpush1.bf16.msra.mxu0 0
        %613 = vmatprep.subr.bf16.mxu0 0
        %614 = vmatpush1.bf16.msra.mxu0 0
        %615 = vmatprep.subr.bf16.mxu0 0
        %616 = vmatpush1.bf16.msra.mxu0 0
        %617 = vmatprep.subr.bf16.mxu0 0
        %618 = vmatpush1.bf16.msra.mxu0 0
        %619 = vmatprep.subr.bf16.mxu0 0
        %620 = vmatpush1.bf16.msra.mxu0 0
        %621 = vmatprep.subr.bf16.mxu0 0
        %622 = vmatpush1.bf16.msra.mxu0 0
        %623 = vmatprep.subr.bf16.mxu0 0
        %624 = vmatpush1.bf16.msra.mxu0 0
        %625 = vmatprep.subr.bf16.mxu0 0
        %626 = vmatpush1.bf16.msra.mxu0 0
        %627 = vmatprep.subr.bf16.mxu0 0
        %628 = vmatpush1.bf16.msra.mxu0 0
        %629 = vmatprep.subr.bf16.mxu0 0
        %630 = vmatpush1.bf16.msra.mxu0 0
        %631 = vmatprep.subr.bf16.mxu0 0
        %632 = vmatpush1.bf16.msra.mxu0 0
        %633 = vmatprep.subr.bf16.mxu0 0
        %634 = vmatpush1.bf16.msra.mxu0 0
        %635 = vmatprep.mubr.bf16.mxu0 0
        %636 = vmatmul.mubr.bf16.gmra.mrb[0].mxu0 %v601
        %v637 = vpop.f32.mrb[0].mxu0
        %v638 = vadd.f32 %v463, %v637
        %v639 = vpop.f32.mrb[0].mxu0
        %v640 = vadd.f32 %v465, %v639
        %v641 = vpop.f32.mrb[0].mxu0
        %v642 = vadd.f32 %v467, %v641
        %v643 = vpop.f32.mrb[0].mxu0
        %v644 = vadd.f32 %v469, %v643
        %645 = vdwg.mxu0
        %646 = vmatprep.subr.bf16.mxu0 %v363
        %647 = vmatpush1.bf16.msra.mxu0 %v362
        %648 = vmatprep.subr.bf16.mxu0 %v371
        %649 = vmatpush1.bf16.msra.mxu0 %v370
        %650 = vmatprep.subr.bf16.mxu0 %v379
        %651 = vmatpush1.bf16.msra.mxu0 %v378
        %652 = vmatprep.subr.bf16.mxu0 %v387
        %653 = vmatpush1.bf16.msra.mxu0 %v386
        %654 = vmatprep.subr.bf16.mxu0 0
        %655 = vmatpush1.bf16.msra.mxu0 0
        %656 = vmatprep.subr.bf16.mxu0 0
        %657 = vmatpush1.bf16.msra.mxu0 0
        %658 = vmatprep.subr.bf16.mxu0 0
        %659 = vmatpush1.bf16.msra.mxu0 0
        %660 = vmatprep.subr.bf16.mxu0 0
        %661 = vmatpush1.bf16.msra.mxu0 0
        %662 = vmatprep.subr.bf16.mxu0 0
        %663 = vmatpush1.bf16.msra.mxu0 0
        %664 = vmatprep.subr.bf16.mxu0 0
        %665 = vmatpush1.bf16.msra.mxu0 0
        %666 = vmatprep.subr.bf16.mxu0 0
        %667 = vmatpush1.bf16.msra.mxu0 0
        %668 = vmatprep.subr.bf16.mxu0 0
        %669 = vmatpush1.bf16.msra.mxu0 0
        %670 = vmatprep.subr.bf16.mxu0 0
        %671 = vmatpush1.bf16.msra.mxu0 0
        %672 = vmatprep.subr.bf16.mxu0 0
        %673 = vmatpush1.bf16.msra.mxu0 0
        %674 = vmatprep.subr.bf16.mxu0 0
        %675 = vmatpush1.bf16.msra.mxu0 0
        %676 = vmatprep.subr.bf16.mxu0 0
        %677 = vmatpush1.bf16.msra.mxu0 0
        %678 = vmatprep.mubr.bf16.mxu0 0
        %679 = vmatmul.mubr.bf16.gmra.mrb[0].mxu0 %v601
        %v680 = vpop.f32.mrb[0].mxu0
        %v681 = vadd.f32 %v506, %v680
        %v682 = vpop.f32.mrb[0].mxu0
        %v683 = vadd.f32 %v508, %v682
        %v684 = vpop.f32.mrb[0].mxu0
        %v685 = vadd.f32 %v510, %v684
        %v686 = vpop.f32.mrb[0].mxu0
        %v687 = vadd.f32 %v512, %v686
        %688 = vdwg.mxu0
        %689 = vmatprep.subr.bf16.mxu0 %v365
        %690 = vmatpush1.bf16.msra.mxu0 %v364
        %691 = vmatprep.subr.bf16.mxu0 %v373
        %692 = vmatpush1.bf16.msra.mxu0 %v372
        %693 = vmatprep.subr.bf16.mxu0 %v381
        %694 = vmatpush1.bf16.msra.mxu0 %v380
        %695 = vmatprep.subr.bf16.mxu0 %v389
        %696 = vmatpush1.bf16.msra.mxu0 %v388
        %697 = vmatprep.subr.bf16.mxu0 0
        %698 = vmatpush1.bf16.msra.mxu0 0
        %699 = vmatprep.subr.bf16.mxu0 0
        %700 = vmatpush1.bf16.msra.mxu0 0
        %701 = vmatprep.subr.bf16.mxu0 0
        %702 = vmatpush1.bf16.msra.mxu0 0
        %703 = vmatprep.subr.bf16.mxu0 0
        %704 = vmatpush1.bf16.msra.mxu0 0
        %705 = vmatprep.subr.bf16.mxu0 0
        %706 = vmatpush1.bf16.msra.mxu0 0
        %707 = vmatprep.subr.bf16.mxu0 0
        %708 = vmatpush1.bf16.msra.mxu0 0
        %709 = vmatprep.subr.bf16.mxu0 0
        %710 = vmatpush1.bf16.msra.mxu0 0
        %711 = vmatprep.subr.bf16.mxu0 0
        %712 = vmatpush1.bf16.msra.mxu0 0
        %713 = vmatprep.subr.bf16.mxu0 0
        %714 = vmatpush1.bf16.msra.mxu0 0
        %715 = vmatprep.subr.bf16.mxu0 0
        %716 = vmatpush1.bf16.msra.mxu0 0
        %717 = vmatprep.subr.bf16.mxu0 0
        %718 = vmatpush1.bf16.msra.mxu0 0
        %719 = vmatprep.subr.bf16.mxu0 0
        %720 = vmatpush1.bf16.msra.mxu0 0
        %721 = vmatprep.mubr.bf16.mxu0 0
        %722 = vmatmul.mubr.bf16.gmra.mrb[0].mxu0 %v601
        %v723 = vpop.f32.mrb[0].mxu0
        %v724 = vadd.f32 %v549, %v723
        %v725 = vpop.f32.mrb[0].mxu0
        %v726 = vadd.f32 %v551, %v725
        %v727 = vpop.f32.mrb[0].mxu0
        %v728 = vadd.f32 %v553, %v727
        %v729 = vpop.f32.mrb[0].mxu0
        %v730 = vadd.f32 %v555, %v729
        %731 = vdwg.mxu0
        %732 = vmatprep.subr.bf16.mxu0 %v367
        %733 = vmatpush1.bf16.msra.mxu0 %v366
        %734 = vmatprep.subr.bf16.mxu0 %v375
        %735 = vmatpush1.bf16.msra.mxu0 %v374
        %736 = vmatprep.subr.bf16.mxu0 %v383
        %737 = vmatpush1.bf16.msra.mxu0 %v382
        %738 = vmatprep.subr.bf16.mxu0 %v391
        %739 = vmatpush1.bf16.msra.mxu0 %v390
        %740 = vmatprep.subr.bf16.mxu0 0
        %741 = vmatpush1.bf16.msra.mxu0 0
        %742 = vmatprep.subr.bf16.mxu0 0
        %743 = vmatpush1.bf16.msra.mxu0 0
        %744 = vmatprep.subr.bf16.mxu0 0
        %745 = vmatpush1.bf16.msra.mxu0 0
        %746 = vmatprep.subr.bf16.mxu0 0
        %747 = vmatpush1.bf16.msra.mxu0 0
        %748 = vmatprep.subr.bf16.mxu0 0
        %749 = vmatpush1.bf16.msra.mxu0 0
        %750 = vmatprep.subr.bf16.mxu0 0
        %751 = vmatpush1.bf16.msra.mxu0 0
        %752 = vmatprep.subr.bf16.mxu0 0
        %753 = vmatpush1.bf16.msra.mxu0 0
        %754 = vmatprep.subr.bf16.mxu0 0
        %755 = vmatpush1.bf16.msra.mxu0 0
        %756 = vmatprep.subr.bf16.mxu0 0
        %757 = vmatpush1.bf16.msra.mxu0 0
        %758 = vmatprep.subr.bf16.mxu0 0
        %759 = vmatpush1.bf16.msra.mxu0 0
        %760 = vmatprep.subr.bf16.mxu0 0
        %761 = vmatpush1.bf16.msra.mxu0 0
        %762 = vmatprep.subr.bf16.mxu0 0
        %763 = vmatpush1.bf16.msra.mxu0 0
        %764 = vmatprep.mubr.bf16.mxu0 0
        %765 = vmatmul.mubr.bf16.gmra.mrb[0].mxu0 %v601
        %v766 = vpop.f32.mrb[0].mxu0
        %v767 = vadd.f32 %v592, %v766
        %v768 = vpop.f32.mrb[0].mxu0
        %v769 = vadd.f32 %v594, %v768
        %v770 = vpop.f32.mrb[0].mxu0
        %v771 = vadd.f32 %v596, %v770
        %v772 = vpop.f32.mrb[0].mxu0
        %v773 = vadd.f32 %v598, %v772
        %774 = vdwg.mxu0
        %v776 = vsel %vm424, %v231, 0
        %778 = vmatprep.subr.bf16.mxu0 %v361
        %779 = vmatpush1.bf16.msra.mxu0 %v360
        %780 = vmatprep.subr.bf16.mxu0 %v369
        %781 = vmatpush1.bf16.msra.mxu0 %v368
        %782 = vmatprep.subr.bf16.mxu0 %v377
        %783 = vmatpush1.bf16.msra.mxu0 %v376
        %784 = vmatprep.subr.bf16.mxu0 %v385
        %785 = vmatpush1.bf16.msra.mxu0 %v384
        %786 = vmatprep.subr.bf16.mxu0 0
        %787 = vmatpush1.bf16.msra.mxu0 0
        %788 = vmatprep.subr.bf16.mxu0 0
        %789 = vmatpush1.bf16.msra.mxu0 0
        %790 = vmatprep.subr.bf16.mxu0 0
        %791 = vmatpush1.bf16.msra.mxu0 0
        %792 = vmatprep.subr.bf16.mxu0 0
        %793 = vmatpush1.bf16.msra.mxu0 0
        %794 = vmatprep.subr.bf16.mxu0 0
        %795 = vmatpush1.bf16.msra.mxu0 0
        %796 = vmatprep.subr.bf16.mxu0 0
        %797 = vmatpush1.bf16.msra.mxu0 0
        %798 = vmatprep.subr.bf16.mxu0 0
        %799 = vmatpush1.bf16.msra.mxu0 0
        %800 = vmatprep.subr.bf16.mxu0 0
        %801 = vmatpush1.bf16.msra.mxu0 0
        %802 = vmatprep.subr.bf16.mxu0 0
        %803 = vmatpush1.bf16.msra.mxu0 0
        %804 = vmatprep.subr.bf16.mxu0 0
        %805 = vmatpush1.bf16.msra.mxu0 0
        %806 = vmatprep.subr.bf16.mxu0 0
        %807 = vmatpush1.bf16.msra.mxu0 0
        %808 = vmatprep.subr.bf16.mxu0 0
        %809 = vmatpush1.bf16.msra.mxu0 0
        %810 = vmatprep.mubr.bf16.mxu0 0
        %811 = vmatmul.mubr.bf16.gmra.mrb[0].mxu0 %v776
        %v812 = vpop.f32.mrb[0].mxu0
        %v813 = vadd.f32 0.0, %v812
        %v814 = vpop.f32.mrb[0].mxu0
        %v815 = vadd.f32 0.0, %v814
        %v816 = vpop.f32.mrb[0].mxu0
        %v817 = vadd.f32 0.0, %v816
        %v818 = vpop.f32.mrb[0].mxu0
        %v819 = vadd.f32 0.0, %v818
        %820 = vdwg.mxu0
        %821 = vmatprep.subr.bf16.mxu0 %v363
        %822 = vmatpush1.bf16.msra.mxu0 %v362
        %823 = vmatprep.subr.bf16.mxu0 %v371
        %824 = vmatpush1.bf16.msra.mxu0 %v370
        %825 = vmatprep.subr.bf16.mxu0 %v379
        %826 = vmatpush1.bf16.msra.mxu0 %v378
        %827 = vmatprep.subr.bf16.mxu0 %v387
        %828 = vmatpush1.bf16.msra.mxu0 %v386
        %829 = vmatprep.subr.bf16.mxu0 0
        %830 = vmatpush1.bf16.msra.mxu0 0
        %831 = vmatprep.subr.bf16.mxu0 0
        %832 = vmatpush1.bf16.msra.mxu0 0
        %833 = vmatprep.subr.bf16.mxu0 0
        %834 = vmatpush1.bf16.msra.mxu0 0
        %835 = vmatprep.subr.bf16.mxu0 0
        %836 = vmatpush1.bf16.msra.mxu0 0
        %837 = vmatprep.subr.bf16.mxu0 0
        %838 = vmatpush1.bf16.msra.mxu0 0
        %839 = vmatprep.subr.bf16.mxu0 0
        %840 = vmatpush1.bf16.msra.mxu0 0
        %841 = vmatprep.subr.bf16.mxu0 0
        %842 = vmatpush1.bf16.msra.mxu0 0
        %843 = vmatprep.subr.bf16.mxu0 0
        %844 = vmatpush1.bf16.msra.mxu0 0
        %845 = vmatprep.subr.bf16.mxu0 0
        %846 = vmatpush1.bf16.msra.mxu0 0
        %847 = vmatprep.subr.bf16.mxu0 0
        %848 = vmatpush1.bf16.msra.mxu0 0
        %849 = vmatprep.subr.bf16.mxu0 0
        %850 = vmatpush1.bf16.msra.mxu0 0
        %851 = vmatprep.subr.bf16.mxu0 0
        %852 = vmatpush1.bf16.msra.mxu0 0
        %853 = vmatprep.mubr.bf16.mxu0 0
        %854 = vmatmul.mubr.bf16.gmra.mrb[0].mxu0 %v776
        %v855 = vpop.f32.mrb[0].mxu0
        %v856 = vadd.f32 0.0, %v855
        %v857 = vpop.f32.mrb[0].mxu0
        %v858 = vadd.f32 0.0, %v857
        %v859 = vpop.f32.mrb[0].mxu0
        %v860 = vadd.f32 0.0, %v859
        %v861 = vpop.f32.mrb[0].mxu0
        %v862 = vadd.f32 0.0, %v861
        %863 = vdwg.mxu0
        %864 = vmatprep.subr.bf16.mxu0 %v365
        %865 = vmatpush1.bf16.msra.mxu0 %v364
        %866 = vmatprep.subr.bf16.mxu0 %v373
        %867 = vmatpush1.bf16.msra.mxu0 %v372
        %868 = vmatprep.subr.bf16.mxu0 %v381
        %869 = vmatpush1.bf16.msra.mxu0 %v380
        %870 = vmatprep.subr.bf16.mxu0 %v389
        %871 = vmatpush1.bf16.msra.mxu0 %v388
        %872 = vmatprep.subr.bf16.mxu0 0
        %873 = vmatpush1.bf16.msra.mxu0 0
        %874 = vmatprep.subr.bf16.mxu0 0
        %875 = vmatpush1.bf16.msra.mxu0 0
        %876 = vmatprep.subr.bf16.mxu0 0
        %877 = vmatpush1.bf16.msra.mxu0 0
        %878 = vmatprep.subr.bf16.mxu0 0
        %879 = vmatpush1.bf16.msra.mxu0 0
        %880 = vmatprep.subr.bf16.mxu0 0
        %881 = vmatpush1.bf16.msra.mxu0 0
        %882 = vmatprep.subr.bf16.mxu0 0
        %883 = vmatpush1.bf16.msra.mxu0 0
        %884 = vmatprep.subr.bf16.mxu0 0
        %885 = vmatpush1.bf16.msra.mxu0 0
        %886 = vmatprep.subr.bf16.mxu0 0
        %887 = vmatpush1.bf16.msra.mxu0 0
        %888 = vmatprep.subr.bf16.mxu0 0
        %889 = vmatpush1.bf16.msra.mxu0 0
        %890 = vmatprep.subr.bf16.mxu0 0
        %891 = vmatpush1.bf16.msra.mxu0 0
        %892 = vmatprep.subr.bf16.mxu0 0
        %893 = vmatpush1.bf16.msra.mxu0 0
        %894 = vmatprep.subr.bf16.mxu0 0
        %895 = vmatpush1.bf16.msra.mxu0 0
        %896 = vmatprep.mubr.bf16.mxu0 0
        %897 = vmatmul.mubr.bf16.gmra.mrb[0].mxu0 %v776
        %v898 = vpop.f32.mrb[0].mxu0
        %v899 = vadd.f32 0.0, %v898
        %v900 = vpop.f32.mrb[0].mxu0
        %v901 = vadd.f32 0.0, %v900
        %v902 = vpop.f32.mrb[0].mxu0
        %v903 = vadd.f32 0.0, %v902
        %v904 = vpop.f32.mrb[0].mxu0
        %v905 = vadd.f32 0.0, %v904
        %906 = vdwg.mxu0
        %907 = vmatprep.subr.bf16.mxu0 %v367
        %908 = vmatpush1.bf16.msra.mxu0 %v366
        %909 = vmatprep.subr.bf16.mxu0 %v375
        %910 = vmatpush1.bf16.msra.mxu0 %v374
        %911 = vmatprep.subr.bf16.mxu0 %v383
        %912 = vmatpush1.bf16.msra.mxu0 %v382
        %913 = vmatprep.subr.bf16.mxu0 %v391
        %914 = vmatpush1.bf16.msra.mxu0 %v390
        %915 = vmatprep.subr.bf16.mxu0 0
        %916 = vmatpush1.bf16.msra.mxu0 0
        %917 = vmatprep.subr.bf16.mxu0 0
        %918 = vmatpush1.bf16.msra.mxu0 0
        %919 = vmatprep.subr.bf16.mxu0 0
        %920 = vmatpush1.bf16.msra.mxu0 0
        %921 = vmatprep.subr.bf16.mxu0 0
        %922 = vmatpush1.bf16.msra.mxu0 0
        %923 = vmatprep.subr.bf16.mxu0 0
        %924 = vmatpush1.bf16.msra.mxu0 0
        %925 = vmatprep.subr.bf16.mxu0 0
        %926 = vmatpush1.bf16.msra.mxu0 0
        %927 = vmatprep.subr.bf16.mxu0 0
        %928 = vmatpush1.bf16.msra.mxu0 0
        %929 = vmatprep.subr.bf16.mxu0 0
        %930 = vmatpush1.bf16.msra.mxu0 0
        %931 = vmatprep.subr.bf16.mxu0 0
        %932 = vmatpush1.bf16.msra.mxu0 0
        %933 = vmatprep.subr.bf16.mxu0 0
        %934 = vmatpush1.bf16.msra.mxu0 0
        %935 = vmatprep.subr.bf16.mxu0 0
        %936 = vmatpush1.bf16.msra.mxu0 0
        %937 = vmatprep.subr.bf16.mxu0 0
        %938 = vmatpush1.bf16.msra.mxu0 0
        %939 = vmatprep.mubr.bf16.mxu0 0
        %940 = vmatmul.mubr.bf16.gmra.mrb[0].mxu0 %v776
        %v941 = vpop.f32.mrb[0].mxu0
        %v942 = vadd.f32 0.0, %v941
        %v943 = vpop.f32.mrb[0].mxu0
        %v944 = vadd.f32 0.0, %v943
        %v945 = vpop.f32.mrb[0].mxu0
        %v946 = vadd.f32 0.0, %v945
        %v947 = vpop.f32.mrb[0].mxu0
        %v948 = vadd.f32 0.0, %v947
        %949 = vdwg.mxu0
        %v950 = vadd.f32 %v638, %v813
        %v951 = vadd.f32 %v640, %v815
        %v952 = vadd.f32 %v681, %v856
        %v953 = vadd.f32 %v683, %v858
        %v954 = vadd.f32 %v724, %v899
        %v955 = vadd.f32 %v726, %v901
        %v956 = vadd.f32 %v767, %v942
        %v957 = vadd.f32 %v769, %v944
        %v958 = vadd.f32 %v642, %v817
        %v959 = vadd.f32 %v644, %v819
        %v960 = vadd.f32 %v685, %v860
        %v961 = vadd.f32 %v687, %v862
        %v962 = vadd.f32 %v728, %v903
        %v963 = vadd.f32 %v730, %v905
        %v964 = vadd.f32 %v771, %v946
        %v965 = vadd.f32 %v773, %v948
        %v966 = vld [vmem:[#allocation7] ss:$8 sm:$0xf]
        %v967 = vld [vmem:[#allocation7] ss:$8 sm:$0xf0]
        %v968 = vor.u32 %v966, %v967
        %s969 = scalar_lea.vmem [#allocation7], 1
        %v970 = vld [vmem:[%s969] ss:$8 sm:$0xf]
        %v971 = vld [vmem:[%s969] ss:$8 sm:$0xf0]
        %v972 = vor.u32 %v970, %v971
        %s973 = scalar_lea.vmem [#allocation7], 2
        %v974 = vld [vmem:[%s973] ss:$8 sm:$0xf]
        %v975 = vld [vmem:[%s973] ss:$8 sm:$0xf0]
        %v976 = vor.u32 %v974, %v975
        %s977 = scalar_lea.vmem [#allocation7], 3
        %v978 = vld [vmem:[%s977] ss:$8 sm:$0xf]
        %v979 = vld [vmem:[%s977] ss:$8 sm:$0xf0]
        %v980 = vor.u32 %v978, %v979
        %s981 = scalar_lea.vmem [#allocation7], 4
        %v982 = vld [vmem:[%s981] ss:$8 sm:$0xf]
        %v983 = vld [vmem:[%s981] ss:$8 sm:$0xf0]
        %v984 = vor.u32 %v982, %v983
        %v986 = vlaneseq
        %v987 = vshrl.u32 %v986, 7
        %v988 = vsub.s32 0, %v987
        %v989 = vrot.slane %v968, %v988
        %v990 = vlaneseq
        %v991 = vshrl.u32 %v990, 7
        %v992 = vsub.s32 1, %v991
        %v993 = vrot.slane %v968, %v992
        %v994 = vlaneseq
        %v995 = vshrl.u32 %v994, 7
        %v996 = vsub.s32 2, %v995
        %v997 = vrot.slane %v968, %v996
        %v998 = vlaneseq
        %v999 = vshrl.u32 %v998, 7
        %v1000 = vsub.s32 3, %v999
        %v1001 = vrot.slane %v968, %v1000
        %v1002 = vlaneseq
        %v1003 = vshrl.u32 %v1002, 7
        %v1004 = vsub.s32 4, %v1003
        %v1005 = vrot.slane %v968, %v1004
        %v1006 = vlaneseq
        %v1007 = vshrl.u32 %v1006, 7
        %v1008 = vsub.s32 5, %v1007
        %v1009 = vrot.slane %v968, %v1008
        %v1010 = vlaneseq
        %v1011 = vshrl.u32 %v1010, 7
        %v1012 = vsub.s32 6, %v1011
        %v1013 = vrot.slane %v968, %v1012
        %v1014 = vlaneseq
        %v1015 = vshrl.u32 %v1014, 7
        %v1016 = vsub.s32 7, %v1015
        %v1017 = vrot.slane %v968, %v1016
        %v1026 = vmul.f32 %v950, %v989
        %v1027 = vmul.f32 %v951, %v993
        %v1028 = vmul.f32 %v952, %v997
        %v1029 = vmul.f32 %v953, %v1001
        %v1030 = vmul.f32 %v954, %v1005
        %v1031 = vmul.f32 %v955, %v1009
        %v1032 = vmul.f32 %v956, %v1013
        %v1033 = vmul.f32 %v957, %v1017
        %v1034 = vmul.f32 %v958, %v989
        %v1035 = vmul.f32 %v959, %v993
        %v1036 = vmul.f32 %v960, %v997
        %v1037 = vmul.f32 %v961, %v1001
        %v1038 = vmul.f32 %v962, %v1005
        %v1039 = vmul.f32 %v963, %v1009
        %v1040 = vmul.f32 %v964, %v1013
        %v1041 = vmul.f32 %v965, %v1017
        %v1043 = vlaneseq
        %v1044 = vshrl.u32 %v1043, 7
        %v1045 = vsub.s32 0, %v1044
        %v1046 = vrot.slane %v972, %v1045
        %v1047 = vlaneseq
        %v1048 = vshrl.u32 %v1047, 7
        %v1049 = vsub.s32 1, %v1048
        %v1050 = vrot.slane %v972, %v1049
        %v1051 = vlaneseq
        %v1052 = vshrl.u32 %v1051, 7
        %v1053 = vsub.s32 2, %v1052
        %v1054 = vrot.slane %v972, %v1053
        %v1055 = vlaneseq
        %v1056 = vshrl.u32 %v1055, 7
        %v1057 = vsub.s32 3, %v1056
        %v1058 = vrot.slane %v972, %v1057
        %v1059 = vlaneseq
        %v1060 = vshrl.u32 %v1059, 7
        %v1061 = vsub.s32 4, %v1060
        %v1062 = vrot.slane %v972, %v1061
        %v1063 = vlaneseq
        %v1064 = vshrl.u32 %v1063, 7
        %v1065 = vsub.s32 5, %v1064
        %v1066 = vrot.slane %v972, %v1065
        %v1067 = vlaneseq
        %v1068 = vshrl.u32 %v1067, 7
        %v1069 = vsub.s32 6, %v1068
        %v1070 = vrot.slane %v972, %v1069
        %v1071 = vlaneseq
        %v1072 = vshrl.u32 %v1071, 7
        %v1073 = vsub.s32 7, %v1072
        %v1074 = vrot.slane %v972, %v1073
        %v1083 = vadd.f32 %v1026, %v1046
        %v1084 = vadd.f32 %v1027, %v1050
        %v1085 = vadd.f32 %v1028, %v1054
        %v1086 = vadd.f32 %v1029, %v1058
        %v1087 = vadd.f32 %v1030, %v1062
        %v1088 = vadd.f32 %v1031, %v1066
        %v1089 = vadd.f32 %v1032, %v1070
        %v1090 = vadd.f32 %v1033, %v1074
        %v1091 = vadd.f32 %v1034, %v1046
        %v1092 = vadd.f32 %v1035, %v1050
        %v1093 = vadd.f32 %v1036, %v1054
        %v1094 = vadd.f32 %v1037, %v1058
        %v1095 = vadd.f32 %v1038, %v1062
        %v1096 = vadd.f32 %v1039, %v1066
        %v1097 = vadd.f32 %v1040, %v1070
        %v1098 = vadd.f32 %v1041, %v1074
        %v1100 = vlaneseq
        %v1101 = vshrl.u32 %v1100, 7
        %v1102 = vsub.s32 0, %v1101
        %v1103 = vrot.slane %v976, %v1102
        %v1104 = vlaneseq
        %v1105 = vshrl.u32 %v1104, 7
        %v1106 = vsub.s32 1, %v1105
        %v1107 = vrot.slane %v976, %v1106
        %v1108 = vlaneseq
        %v1109 = vshrl.u32 %v1108, 7
        %v1110 = vsub.s32 2, %v1109
        %v1111 = vrot.slane %v976, %v1110
        %v1112 = vlaneseq
        %v1113 = vshrl.u32 %v1112, 7
        %v1114 = vsub.s32 3, %v1113
        %v1115 = vrot.slane %v976, %v1114
        %v1116 = vlaneseq
        %v1117 = vshrl.u32 %v1116, 7
        %v1118 = vsub.s32 4, %v1117
        %v1119 = vrot.slane %v976, %v1118
        %v1120 = vlaneseq
        %v1121 = vshrl.u32 %v1120, 7
        %v1122 = vsub.s32 5, %v1121
        %v1123 = vrot.slane %v976, %v1122
        %v1124 = vlaneseq
        %v1125 = vshrl.u32 %v1124, 7
        %v1126 = vsub.s32 6, %v1125
        %v1127 = vrot.slane %v976, %v1126
        %v1128 = vlaneseq
        %v1129 = vshrl.u32 %v1128, 7
        %v1130 = vsub.s32 7, %v1129
        %v1131 = vrot.slane %v976, %v1130
        %v1140 = vsub.f32 %v1083, %v1103
        %v1141 = vsub.f32 %v1084, %v1107
        %v1142 = vsub.f32 %v1085, %v1111
        %v1143 = vsub.f32 %v1086, %v1115
        %v1144 = vsub.f32 %v1087, %v1119
        %v1145 = vsub.f32 %v1088, %v1123
        %v1146 = vsub.f32 %v1089, %v1127
        %v1147 = vsub.f32 %v1090, %v1131
        %v1148 = vsub.f32 %v1091, %v1103
        %v1149 = vsub.f32 %v1092, %v1107
        %v1150 = vsub.f32 %v1093, %v1111
        %v1151 = vsub.f32 %v1094, %v1115
        %v1152 = vsub.f32 %v1095, %v1119
        %v1153 = vsub.f32 %v1096, %v1123
        %v1154 = vsub.f32 %v1097, %v1127
        %v1155 = vsub.f32 %v1098, %v1131
        %v1156 = vmul.f32 %v1140, %v1140
        %v1157 = vmul.f32 %v1141, %v1141
        %v1158 = vmul.f32 %v1142, %v1142
        %v1159 = vmul.f32 %v1143, %v1143
        %v1160 = vmul.f32 %v1144, %v1144
        %v1161 = vmul.f32 %v1145, %v1145
        %v1162 = vmul.f32 %v1146, %v1146
        %v1163 = vmul.f32 %v1147, %v1147
        %v1164 = vmul.f32 %v1148, %v1148
        %v1165 = vmul.f32 %v1149, %v1149
        %v1166 = vmul.f32 %v1150, %v1150
        %v1167 = vmul.f32 %v1151, %v1151
        %v1168 = vmul.f32 %v1152, %v1152
        %v1169 = vmul.f32 %v1153, %v1153
        %v1170 = vmul.f32 %v1154, %v1154
        %v1171 = vmul.f32 %v1155, %v1155
        %v1173 = vlaneseq
        %v1174 = vshrl.u32 %v1173, 7
        %v1175 = vsub.s32 0, %v1174
        %v1176 = vrot.slane %v980, %v1175
        %v1177 = vlaneseq
        %v1178 = vshrl.u32 %v1177, 7
        %v1179 = vsub.s32 1, %v1178
        %v1180 = vrot.slane %v980, %v1179
        %v1181 = vlaneseq
        %v1182 = vshrl.u32 %v1181, 7
        %v1183 = vsub.s32 2, %v1182
        %v1184 = vrot.slane %v980, %v1183
        %v1185 = vlaneseq
        %v1186 = vshrl.u32 %v1185, 7
        %v1187 = vsub.s32 3, %v1186
        %v1188 = vrot.slane %v980, %v1187
        %v1189 = vlaneseq
        %v1190 = vshrl.u32 %v1189, 7
        %v1191 = vsub.s32 4, %v1190
        %v1192 = vrot.slane %v980, %v1191
        %v1193 = vlaneseq
        %v1194 = vshrl.u32 %v1193, 7
        %v1195 = vsub.s32 5, %v1194
        %v1196 = vrot.slane %v980, %v1195
        %v1197 = vlaneseq
        %v1198 = vshrl.u32 %v1197, 7
        %v1199 = vsub.s32 6, %v1198
        %v1200 = vrot.slane %v980, %v1199
        %v1201 = vlaneseq
        %v1202 = vshrl.u32 %v1201, 7
        %v1203 = vsub.s32 7, %v1202
        %v1204 = vrot.slane %v980, %v1203
        %v1213 = vmul.f32 %v1156, %v1176
        %v1214 = vmul.f32 %v1157, %v1180
        %v1215 = vmul.f32 %v1158, %v1184
        %v1216 = vmul.f32 %v1159, %v1188
        %v1217 = vmul.f32 %v1160, %v1192
        %v1218 = vmul.f32 %v1161, %v1196
        %v1219 = vmul.f32 %v1162, %v1200
        %v1220 = vmul.f32 %v1163, %v1204
        %v1221 = vmul.f32 %v1164, %v1176
        %v1222 = vmul.f32 %v1165, %v1180
        %v1223 = vmul.f32 %v1166, %v1184
        %v1224 = vmul.f32 %v1167, %v1188
        %v1225 = vmul.f32 %v1168, %v1192
        %v1226 = vmul.f32 %v1169, %v1196
        %v1227 = vmul.f32 %v1170, %v1200
        %v1228 = vmul.f32 %v1171, %v1204
        %v1229 = vmul.f32 %v1213, 1.442695
        %v1230 = vpow.pop %v1229
        %v1231 = vmul.f32 %v1214, 1.442695
        %v1232 = vpow.pop %v1231
        %v1233 = vmul.f32 %v1215, 1.442695
        %v1234 = vpow.pop %v1233
        %v1235 = vmul.f32 %v1216, 1.442695
        %v1236 = vpow.pop %v1235
        %v1237 = vmul.f32 %v1217, 1.442695
        %v1238 = vpow.pop %v1237
        %v1239 = vmul.f32 %v1218, 1.442695
        %v1240 = vpow.pop %v1239
        %v1241 = vmul.f32 %v1219, 1.442695
        %v1242 = vpow.pop %v1241
        %v1243 = vmul.f32 %v1220, 1.442695
        %v1244 = vpow.pop %v1243
        %v1245 = vmul.f32 %v1221, 1.442695
        %v1246 = vpow.pop %v1245
        %v1247 = vmul.f32 %v1222, 1.442695
        %v1248 = vpow.pop %v1247
        %v1249 = vmul.f32 %v1223, 1.442695
        %v1250 = vpow.pop %v1249
        %v1251 = vmul.f32 %v1224, 1.442695
        %v1252 = vpow.pop %v1251
        %v1253 = vmul.f32 %v1225, 1.442695
        %v1254 = vpow.pop %v1253
        %v1255 = vmul.f32 %v1226, 1.442695
        %v1256 = vpow.pop %v1255
        %v1257 = vmul.f32 %v1227, 1.442695
        %v1258 = vpow.pop %v1257
        %v1259 = vmul.f32 %v1228, 1.442695
        %v1260 = vpow.pop %v1259
        %v1262 = vlaneseq
        %v1263 = vshrl.u32 %v1262, 7
        %v1264 = vsub.s32 0, %v1263
        %v1265 = vrot.slane %v984, %v1264
        %v1266 = vlaneseq
        %v1267 = vshrl.u32 %v1266, 7
        %v1268 = vsub.s32 1, %v1267
        %v1269 = vrot.slane %v984, %v1268
        %v1270 = vlaneseq
        %v1271 = vshrl.u32 %v1270, 7
        %v1272 = vsub.s32 2, %v1271
        %v1273 = vrot.slane %v984, %v1272
        %v1274 = vlaneseq
        %v1275 = vshrl.u32 %v1274, 7
        %v1276 = vsub.s32 3, %v1275
        %v1277 = vrot.slane %v984, %v1276
        %v1278 = vlaneseq
        %v1279 = vshrl.u32 %v1278, 7
        %v1280 = vsub.s32 4, %v1279
        %v1281 = vrot.slane %v984, %v1280
        %v1282 = vlaneseq
        %v1283 = vshrl.u32 %v1282, 7
        %v1284 = vsub.s32 5, %v1283
        %v1285 = vrot.slane %v984, %v1284
        %v1286 = vlaneseq
        %v1287 = vshrl.u32 %v1286, 7
        %v1288 = vsub.s32 6, %v1287
        %v1289 = vrot.slane %v984, %v1288
        %v1290 = vlaneseq
        %v1291 = vshrl.u32 %v1290, 7
        %v1292 = vsub.s32 7, %v1291
        %v1293 = vrot.slane %v984, %v1292
        %v1302 = vmul.f32 %v1230, %v1265
        %v1303 = vmul.f32 %v1232, %v1269
        %v1304 = vmul.f32 %v1234, %v1273
        %v1305 = vmul.f32 %v1236, %v1277
        %v1306 = vmul.f32 %v1238, %v1281
        %v1307 = vmul.f32 %v1240, %v1285
        %v1308 = vmul.f32 %v1242, %v1289
        %v1309 = vmul.f32 %v1244, %v1293
        %v1310 = vmul.f32 %v1246, %v1265
        %v1311 = vmul.f32 %v1248, %v1269
        %v1312 = vmul.f32 %v1250, %v1273
        %v1313 = vmul.f32 %v1252, %v1277
        %v1314 = vmul.f32 %v1254, %v1281
        %v1315 = vmul.f32 %v1256, %v1285
        %v1316 = vmul.f32 %v1258, %v1289
        %v1317 = vmul.f32 %v1260, %v1293
        %1318 = vst [vmem:[%s215] sm:$0xff] %v1302
        %1319 = vst [vmem:[%s215 + $0x8] sm:$0xff] %v1303
        %1320 = vst [vmem:[%s215 + $0x10] sm:$0xff] %v1304
        %1321 = vst [vmem:[%s215 + $0x18] sm:$0xff] %v1305
        %1322 = vst [vmem:[%s215 + $0x20] sm:$0xff] %v1306
        %1323 = vst [vmem:[%s215 + $0x28] sm:$0xff] %v1307
        %1324 = vst [vmem:[%s215 + $0x30] sm:$0xff] %v1308
        %1325 = vst [vmem:[%s215 + $0x38] sm:$0xff] %v1309
        %1326 = vst [vmem:[%s215 + $0x40] sm:$0xff] %v1310
        %1327 = vst [vmem:[%s215 + $0x48] sm:$0xff] %v1311
        %1328 = vst [vmem:[%s215 + $0x50] sm:$0xff] %v1312
        %1329 = vst [vmem:[%s215 + $0x58] sm:$0xff] %v1313
        %1330 = vst [vmem:[%s215 + $0x60] sm:$0xff] %v1314
        %1331 = vst [vmem:[%s215 + $0x68] sm:$0xff] %v1315
        %1332 = vst [vmem:[%s215 + $0x70] sm:$0xff] %v1316
        %1333 = vst [vmem:[%s215 + $0x78] sm:$0xff] %v1317
        %s1334 = sand.u32 %s97, 1
        %s1335 = scalar_lea.sflag [#allocation4], %s1334
        %s1336 = sand.u32 %s97, 1
        %s1337 = smul.addr %s1336, 128
        %s1338 = scalar_lea.vmem [#allocation8], %s1337
        // Predicated region
        $region45: #{tpu_custom_call.1} parent=31 // pred_check
          %p1339 = pneg %p107
        $region46: #{tpu_custom_call.1} parent=31 // pred_check_branch
          %1341 = sbr.rel (%p1339) target = $region48
        $region47: #{tpu_custom_call.1} parent=31 // pred_region
          %s1342 = smul.u32 2, %s21
          %s1344 = ssub.s32 2048, 2048
          %1345 = vsyncadd %s1335, %s1344
          %s1346 = smul.addr %s1342, 8
          %s1347 = smul.addr %s1346, 128
          %s1348 = scalar_lea.hbm %s3, %s1347
          %s1349 = sshll.u32 %s1338, 4
          %s1350 = int_to_ptr.vmem [resolvable:$true] %s1349
          %1355 = dma.vmem_to_hbm [thread:$0]  %s1350, 2048, %s1348, %s1335, 1024, 1024, 64
        $region48: #{tpu_custom_call.1} parent=31 // pred_fallthru
          _
      $region32: #{tpu_custom_call.1} parent=5 // pred_fallthru
        _
      %p1356 = scmp.le.s32.totalorder 2, %s16
      // Predicated region
      $region49: #{tpu_custom_call.1} parent=5 // pred_check
        %p1357 = pneg %p1356
      $region50: #{tpu_custom_call.1} parent=5 // pred_check_branch
        %1359 = sbr.rel (%p1357) target = $region52
      $region51: #{tpu_custom_call.1} parent=5 // pred_region
        %s1360 = ssub.s32 %s16, 2
        // Predicated region
        $region53: #{tpu_custom_call.1} parent=51 // pred_check
          %p1361 = pneg %p113
        $region54: #{tpu_custom_call.1} parent=51 // pred_check_branch
          %1363 = sbr.rel (%p1361) target = $region56
        $region55: #{tpu_custom_call.1} parent=51 // pred_region
          %s1364 = sand.u32 %s98, 1
          %s1365 = scalar_lea.sflag [#allocation4], %s1364
          %s1366 = sand.u32 %s98, 1
          %s1367 = smul.addr %s1366, 128
          %s1368 = scalar_lea.vmem [#allocation8], %s1367
          %1369 = dma.done %s1365, 2048
        $region56: #{tpu_custom_call.1} parent=51 // pred_fallthru
          _
      $region52: #{tpu_custom_call.1} parent=5 // pred_fallthru
        _
    $region6: #{tpu_custom_call.1} parent=1 // loop_footer
      %s20 = sadd.s32 1, %s16
    $region7: #{tpu_custom_call.1} parent=1 // loop_footer_branch
      %15 = sbr.rel target = $region3
    $region8: #{tpu_custom_call.1} parent=1 // loop_exit
      _
    %1370 = vsyncpa [#allocation3], 1
    %s1371 = scalar_lea.sflag [#allocation3], 1
    %1372 = vsyncpa %s1371, 1
    %1373 = vsyncpa [#allocation6], 1
    %1374 = vsyncpa [#allocation4], 1
    %s1375 = scalar_lea.sflag [#allocation4], 1
    %1376 = vsyncpa %s1375, 1

</llo_original>
